<compile_context>
chip_gen: v6e
topology: v6e:2x2x1
jax: 0.10.0
libtpu: 0.0.40
codegen_flags: <defaults>
</compile_context>

<pallas_src>
import jax
import jax.numpy as jnp
from jax.experimental import pallas as pl
from jax.experimental.pallas import tpu as pltpu


def gcn_kernel(x_ref, adj_ref, sel_ref, rowblk_ref, colblk_ref,
               w1_ref, b1_ref, w2_ref, b2_ref, w3_ref, b3_ref,
               wf_ref, bf_ref, o_ref):
    # x_ref:    (1, M, F_in)  natural layout, M = bt * N batched nodes
    # adj_ref:  (1, M, N)     row r holds adj[r // N, r % N, :]
    # sel_ref:  (N, M)        sel[j, c] = (c % N == j), constant
    # rowblk/colblk: (M, 1) / (1, M) int32 block ids (r // N), constant
    # weights:  (out, in) PyTorch nn.Linear orientation; biases (1, out) f32
    cdt = x_ref.dtype                      # stream / MXU-input dtype
    x = x_ref[0]                           # (M, F_in)
    adj_c = adj_ref[0]                     # (M, N)

    # Build the (M, M) block-diagonal adjacency ONCE per grid step in VMEM:
    #   bd[r, c] = adj[r//N, r%N, c%N]  if r//N == c//N  else 0
    # Replication across the bt column blocks is a tiny MXU matmul (exact:
    # each output element is a single product), masking is a broadcast compare.
    tiled = jnp.dot(adj_c, sel_ref[...], preferred_element_type=jnp.float32)
    mask = rowblk_ref[...] == colblk_ref[...]          # (M, M) bool
    bd = jnp.where(mask, tiled, 0.0).astype(cdt)       # (M, M)

    def layer(h, w_ref, b_ref):
        # Linear (PyTorch orientation):  h @ W^T + b   -> (M, H), f32 accum.
        h = jax.lax.dot_general(h, w_ref[...], (((1,), (1,)), ((), ())),
                                preferred_element_type=jnp.float32)
        h = (h + b_ref[...]).astype(cdt)
        # einsum('bij,bjd->bid', adj, h)  ==  blockdiag(adj) @ h
        h = jnp.dot(bd, h, preferred_element_type=jnp.float32)
        return jnp.maximum(h, 0.0).astype(cdt)

    h = layer(x, w1_ref, b1_ref)
    h = layer(h, w2_ref, b2_ref)
    h = layer(h, w3_ref, b3_ref)
    out = jax.lax.dot_general(h, wf_ref[...], (((1,), (1,)), ((), ())),
                              preferred_element_type=jnp.float32) + bf_ref[...]
    o_ref[0] = out.astype(o_ref.dtype)                 # (M, H), natural layout


def net_comp_gcn_forward(x, adj, params, *,
                         compute_dtype=jnp.bfloat16,
                         out_dtype=jnp.float32,
                         target_rows=512):
    """x: (B, N, 43), adj: (B, N, N). Returns (B, N, H) in out_dtype.

    target_rows controls M = bt*N per grid step.  Guidance: 512-1024 default;
    up to ~2048 on v6e with vmem_limit raised; keep <= ~1024 on v7x (64 MiB
    physical VMEM).  compute_dtype=float32 disables all bf16 casts.
    """
    B, N, F_in = x.shape
    H = params["w1"].shape[0]

    # --- choose batch-elements-per-step -----------------------------------
    bt = max(1, min(B, max(1, target_rows // max(N, 1))))
    # Megacore (v7x): prefer >= 2 grid steps when each step still has a
    # >=128-wide node axis; no-op on v5e/v6e and on tiny problems.
    if bt >= B and B > 1 and ((B + 1) // 2) * N >= 128:
        bt = (B + 1) // 2
    G = -(-B // bt)                    # number of grid steps
    Bp = G * bt
    M = bt * N

    pad = Bp - B
    x_p = jnp.pad(x, ((0, pad), (0, 0), (0, 0))) if pad else x
    adj_p = jnp.pad(adj, ((0, pad), (0, 0), (0, 0))) if pad else adj

    # Natural-layout streams (leading-dim reshapes only, no transposes).
    x_s = x_p.reshape(G, M, F_in).astype(compute_dtype)
    adj_s = adj_p.reshape(G, M, N).astype(compute_dtype)

    # Tiny constants for the in-kernel block-diagonal construction.
    sel = (jnp.arange(M, dtype=jnp.int32)[None, :] % N ==
           jnp.arange(N, dtype=jnp.int32)[:, None]).astype(compute_dtype)  # (N, M)
    blk = jnp.arange(M, dtype=jnp.int32) // N
    row_blk = blk.reshape(M, 1)
    col_blk = blk.reshape(1, M)

    f32 = jnp.float32
    w1 = params["w1"].astype(compute_dtype)
    w2 = params["w2"].astype(compute_dtype)
    w3 = params["w3"].astype(compute_dtype)
    wf = params["wf"].astype(compute_dtype)
    b1 = params["b1"].reshape(1, H).astype(f32)
    b2 = params["b2"].reshape(1, H).astype(f32)
    b3 = params["b3"].reshape(1, H).astype(f32)
    bf = params["bf"].reshape(1, H).astype(f32)

    # Constant operands: same block every grid step (DMA'd once).
    const = lambda shp: pl.BlockSpec(shp, lambda g: (0,) * len(shp))

    # VMEM estimate; raise the scoped limit only when needed, with headroom
    # below v7x's 64 MiB physical ceiling.
    sb = jnp.dtype(compute_dtype).itemsize
    est_vmem = (2 * M * (F_in + N) * sb          # double-buffered x / adj blocks
                + 2 * M * H * 4                  # double-buffered output blocks
                + M * M * (sb + 4)               # bd + f32 replication temp
                + 2 * N * M * sb + 8 * M         # sel + block-id constants
                + 8 * M * max(H, F_in) * 4)      # layer temporaries / headroom
    cp_kwargs = dict(dimension_semantics=("parallel",))
    if est_vmem > 12 * (1 << 20):
        cp_kwargs["vmem_limit_bytes"] = int(min(2 * est_vmem, 48 * (1 << 20)))

    out_t = pl.pallas_call(
        gcn_kernel,
        out_shape=jax.ShapeDtypeStruct((G, M, H), out_dtype),
        grid_spec=pltpu.PrefetchScalarGridSpec(
            num_scalar_prefetch=0,
            grid=(G,),
            in_specs=[
                pl.BlockSpec((1, M, F_in), lambda g: (g, 0, 0)),   # x (natural)
                pl.BlockSpec((1, M, N), lambda g: (g, 0, 0)),      # adj (compact)
                const((N, M)), const((M, 1)), const((1, M)),       # blockdiag helpers
                const((H, F_in)), const((1, H)),                   # layer 1
                const((H, H)), const((1, H)),                      # layer 2
                const((H, H)), const((1, H)),                      # layer 3
                const((H, H)), const((1, H)),                      # final
            ],
            out_specs=pl.BlockSpec((1, M, H), lambda g: (g, 0, 0)),
        ),
        compiler_params=pltpu.CompilerParams(**cp_kwargs),
    )(x_s, adj_s, sel, row_blk, col_blk, w1, b1, w2, b2, w3, b3, wf, bf)

    # (G, M, H) -> (Bp, N, H): pure reshape, no transpose; drop batch padding.
    return out_t.reshape(Bp, N, H)[:B]


def reference_forward(x, adj, params, compute_dtype=jnp.float32):
    """Pure-JAX reference.  compute_dtype=float32 reproduces the PyTorch module
    exactly; compute_dtype=bfloat16 mirrors the kernel's bf16-at-the-MXU casts
    (f32 math on bf16-rounded operands), so the comparison is tight."""
    f32 = jnp.float32
    q = lambda a: a.astype(compute_dtype).astype(f32)
    h = q(x)
    adj_q = q(adj)
    for w, b in [(params["w1"], params["b1"]),
                 (params["w2"], params["b2"]),
                 (params["w3"], params["b3"])]:
        h = q(h @ q(w).T + b)
        h = q(jnp.maximum(jnp.einsum("bij,bjd->bid", adj_q, h), 0.0))
    return h @ q(params["wf"]).T + params["bf"]


def init_params(key, in_dim, hidden_dim):
    """Deterministic synthetic parameters in PyTorch nn.Linear layout (out, in)."""
    ks = jax.random.split(key, 8)

    def lin(kw, kb, fan_in, fan_out):
        bound = 1.0 / jnp.sqrt(jnp.float32(fan_in))
        w = jax.random.uniform(kw, (fan_out, fan_in), jnp.float32, -bound, bound)
        b = jax.random.uniform(kb, (fan_out,), jnp.float32, -bound, bound)
        return w, b

    w1, b1 = lin(ks[0], ks[1], in_dim, hidden_dim)
    w2, b2 = lin(ks[2], ks[3], hidden_dim, hidden_dim)
    w3, b3 = lin(ks[4], ks[5], hidden_dim, hidden_dim)
    wf, bf = lin(ks[6], ks[7], hidden_dim, hidden_dim)
    return {"w1": w1, "b1": b1, "w2": w2, "b2": b2,
            "w3": w3, "b3": b3, "wf": wf, "bf": bf}


if __name__ == "__main__":
    F_IN, H = 43, 32
    key = jax.random.PRNGKey(0)
    kx, kadj, kp = jax.random.split(key, 3)
    params = init_params(kp, F_IN, H)

    # Small, spec-consistent config.
    B, N = 2, 8
    x = jax.random.normal(kx, (B, N, F_IN), jnp.float32)
    adj = jax.random.uniform(kadj, (B, N, N), jnp.float32)

    out = net_comp_gcn_forward(x, adj, params, compute_dtype=jnp.bfloat16)
    out = jax.block_until_ready(out)
    ref = reference_forward(x, adj, params, compute_dtype=jnp.bfloat16)
    assert out.shape == (B, N, H)
    assert jnp.allclose(out, ref, atol=5e-3, rtol=5e-3), "mismatch vs reference (small)"

    # Larger config exercising M >= 128 lanes, G > 1 grid steps and batch padding.
    B2, N2 = 40, 16
    kx2, ka2 = jax.random.split(jax.random.PRNGKey(1))
    x2 = jax.random.normal(kx2, (B2, N2, F_IN), jnp.float32)
    adj2 = jax.random.uniform(ka2, (B2, N2, N2), jnp.float32)

    out2 = net_comp_gcn_forward(x2, adj2, params, compute_dtype=jnp.bfloat16)
    out2 = jax.block_until_ready(out2)
    ref2 = reference_forward(x2, adj2, params, compute_dtype=jnp.bfloat16)
    assert out2.shape == (B2, N2, H)
    assert jnp.allclose(out2, ref2, atol=5e-3, rtol=5e-3), "mismatch vs reference (large)"

    print("KERNEL_OK")
</pallas_src>

<mosaic_0001>
module attributes {stable_mosaic.version = 11 : i64} {
  func.func @gcn_kernel(%arg0: i32, %arg1: memref<1x16x43xbf16, #tpu.memory_space<vmem>>, %arg2: memref<1x16x8xbf16, #tpu.memory_space<vmem>>, %arg3: memref<8x16xbf16, #tpu.memory_space<vmem>>, %arg4: memref<16x1xi32, #tpu.memory_space<vmem>>, %arg5: memref<1x16xi32, #tpu.memory_space<vmem>>, %arg6: memref<32x43xbf16, #tpu.memory_space<vmem>>, %arg7: memref<1x32xf32, #tpu.memory_space<vmem>>, %arg8: memref<32x32xbf16, #tpu.memory_space<vmem>>, %arg9: memref<1x32xf32, #tpu.memory_space<vmem>>, %arg10: memref<32x32xbf16, #tpu.memory_space<vmem>>, %arg11: memref<1x32xf32, #tpu.memory_space<vmem>>, %arg12: memref<32x32xbf16, #tpu.memory_space<vmem>>, %arg13: memref<1x32xf32, #tpu.memory_space<vmem>>, %arg14: memref<1x16x32xf32, #tpu.memory_space<vmem>>) attributes {dimension_semantics = [#tpu.dimension_semantics<parallel>], iteration_bounds = array<i64: 1>, scalar_prefetch = 0 : i64, scratch_operands = 0 : i64, tpu.core_type = #tpu.core_type<tc>, window_params = [{transform_indices = @transform_0, window_bounds = array<i64: 1, 16, 43>}, {transform_indices = @transform_1, window_bounds = array<i64: 1, 16, 8>}, {pipeline_mode = #tpu.pipeline_mode<synchronous>, transform_indices = @transform_2, window_bounds = array<i64: 8, 16>}, {pipeline_mode = #tpu.pipeline_mode<synchronous>, transform_indices = @transform_3, window_bounds = array<i64: 16, 1>}, {pipeline_mode = #tpu.pipeline_mode<synchronous>, transform_indices = @transform_4, window_bounds = array<i64: 1, 16>}, {pipeline_mode = #tpu.pipeline_mode<synchronous>, transform_indices = @transform_5, window_bounds = array<i64: 32, 43>}, {pipeline_mode = #tpu.pipeline_mode<synchronous>, transform_indices = @transform_6, window_bounds = array<i64: 1, 32>}, {pipeline_mode = #tpu.pipeline_mode<synchronous>, transform_indices = @transform_7, window_bounds = array<i64: 32, 32>}, {pipeline_mode = #tpu.pipeline_mode<synchronous>, transform_indices = @transform_8, window_bounds = array<i64: 1, 32>}, {pipeline_mode = #tpu.pipeline_mode<synchronous>, transform_indices = @transform_9, window_bounds = array<i64: 32, 32>}, {pipeline_mode = #tpu.pipeline_mode<synchronous>, transform_indices = @transform_10, window_bounds = array<i64: 1, 32>}, {pipeline_mode = #tpu.pipeline_mode<synchronous>, transform_indices = @transform_11, window_bounds = array<i64: 32, 32>}, {pipeline_mode = #tpu.pipeline_mode<synchronous>, transform_indices = @transform_12, window_bounds = array<i64: 1, 32>}, {transform_indices = @transform_13, window_bounds = array<i64: 1, 16, 32>}]} {
    %c0 = arith.constant 0 : index
    %c0_0 = arith.constant 0 : index
    %c0_1 = arith.constant 0 : index
    %0 = vector.load %arg1[%c0, %c0_0, %c0_1] : memref<1x16x43xbf16, #tpu.memory_space<vmem>>, vector<1x16x43xbf16>
    %1 = vector.shape_cast %0 : vector<1x16x43xbf16> to vector<16x43xbf16>
    %c0_2 = arith.constant 0 : index
    %c0_3 = arith.constant 0 : index
    %c0_4 = arith.constant 0 : index
    %2 = vector.load %arg2[%c0_2, %c0_3, %c0_4] : memref<1x16x8xbf16, #tpu.memory_space<vmem>>, vector<1x16x8xbf16>
    %3 = vector.shape_cast %2 : vector<1x16x8xbf16> to vector<16x8xbf16>
    %c0_5 = arith.constant 0 : index
    %c0_6 = arith.constant 0 : index
    %4 = vector.load %arg3[%c0_5, %c0_6] : memref<8x16xbf16, #tpu.memory_space<vmem>>, vector<8x16xbf16>
    %cst = arith.constant dense<0.000000e+00> : vector<16x16xf32>
    %5 = tpu.matmul %3, %4, %cst {dimension_numbers = #tpu.dot_dimension_numbers<[1], [0], [0], [1], [0, 0, 1, 1], [], []>} : vector<16x8xbf16>, vector<8x16xbf16>, vector<16x16xf32> -> vector<16x16xf32>
    %c0_7 = arith.constant 0 : index
    %c0_8 = arith.constant 0 : index
    %6 = vector.load %arg4[%c0_7, %c0_8] : memref<16x1xi32, #tpu.memory_space<vmem>>, vector<16x1xi32>
    %c0_9 = arith.constant 0 : index
    %c0_10 = arith.constant 0 : index
    %7 = vector.load %arg5[%c0_9, %c0_10] : memref<1x16xi32, #tpu.memory_space<vmem>>, vector<1x16xi32>
    %8 = vector.broadcast %6 : vector<16x1xi32> to vector<16x16xi32>
    %9 = vector.broadcast %7 : vector<1x16xi32> to vector<16x16xi32>
    %10 = arith.cmpi eq, %8, %9 : vector<16x16xi32>
    %cst_11 = arith.constant 0.000000e+00 : f32
    %11 = vector.broadcast %cst_11 : f32 to vector<16x16xf32>
    %12 = arith.select %10, %5, %11 : vector<16x16xi1>, vector<16x16xf32>
    %13 = arith.truncf %12 : vector<16x16xf32> to vector<16x16xbf16>
    %c0_12 = arith.constant 0 : index
    %c0_13 = arith.constant 0 : index
    %14 = vector.load %arg6[%c0_12, %c0_13] : memref<32x43xbf16, #tpu.memory_space<vmem>>, vector<32x43xbf16>
    %cst_14 = arith.constant dense<0.000000e+00> : vector<16x32xf32>
    %15 = tpu.matmul %1, %14, %cst_14 {dimension_numbers = #tpu.dot_dimension_numbers<[1], [1], [0], [0], [0, 0, 1, 0], [], []>} : vector<16x43xbf16>, vector<32x43xbf16>, vector<16x32xf32> -> vector<16x32xf32>
    %c0_15 = arith.constant 0 : index
    %c0_16 = arith.constant 0 : index
    %16 = vector.load %arg7[%c0_15, %c0_16] : memref<1x32xf32, #tpu.memory_space<vmem>>, vector<1x32xf32>
    %17 = vector.broadcast %16 : vector<1x32xf32> to vector<16x32xf32>
    %18 = arith.addf %15, %17 : vector<16x32xf32>
    %19 = arith.truncf %18 : vector<16x32xf32> to vector<16x32xbf16>
    %cst_17 = arith.constant dense<0.000000e+00> : vector<16x32xf32>
    %20 = tpu.matmul %13, %19, %cst_17 {dimension_numbers = #tpu.dot_dimension_numbers<[1], [0], [0], [1], [0, 0, 1, 1], [], []>} : vector<16x16xbf16>, vector<16x32xbf16>, vector<16x32xf32> -> vector<16x32xf32>
    %cst_18 = arith.constant 0.000000e+00 : f32
    %21 = vector.broadcast %cst_18 : f32 to vector<16x32xf32>
    %22 = arith.maximumf %20, %21 : vector<16x32xf32>
    %23 = arith.truncf %22 : vector<16x32xf32> to vector<16x32xbf16>
    %c0_19 = arith.constant 0 : index
    %c0_20 = arith.constant 0 : index
    %24 = vector.load %arg8[%c0_19, %c0_20] : memref<32x32xbf16, #tpu.memory_space<vmem>>, vector<32x32xbf16>
    %cst_21 = arith.constant dense<0.000000e+00> : vector<16x32xf32>
    %25 = tpu.matmul %23, %24, %cst_21 {dimension_numbers = #tpu.dot_dimension_numbers<[1], [1], [0], [0], [0, 0, 1, 0], [], []>} : vector<16x32xbf16>, vector<32x32xbf16>, vector<16x32xf32> -> vector<16x32xf32>
    %c0_22 = arith.constant 0 : index
    %c0_23 = arith.constant 0 : index
    %26 = vector.load %arg9[%c0_22, %c0_23] : memref<1x32xf32, #tpu.memory_space<vmem>>, vector<1x32xf32>
    %27 = vector.broadcast %26 : vector<1x32xf32> to vector<16x32xf32>
    %28 = arith.addf %25, %27 : vector<16x32xf32>
    %29 = arith.truncf %28 : vector<16x32xf32> to vector<16x32xbf16>
    %cst_24 = arith.constant dense<0.000000e+00> : vector<16x32xf32>
    %30 = tpu.matmul %13, %29, %cst_24 {dimension_numbers = #tpu.dot_dimension_numbers<[1], [0], [0], [1], [0, 0, 1, 1], [], []>} : vector<16x16xbf16>, vector<16x32xbf16>, vector<16x32xf32> -> vector<16x32xf32>
    %cst_25 = arith.constant 0.000000e+00 : f32
    %31 = vector.broadcast %cst_25 : f32 to vector<16x32xf32>
    %32 = arith.maximumf %30, %31 : vector<16x32xf32>
    %33 = arith.truncf %32 : vector<16x32xf32> to vector<16x32xbf16>
    %c0_26 = arith.constant 0 : index
    %c0_27 = arith.constant 0 : index
    %34 = vector.load %arg10[%c0_26, %c0_27] : memref<32x32xbf16, #tpu.memory_space<vmem>>, vector<32x32xbf16>
    %cst_28 = arith.constant dense<0.000000e+00> : vector<16x32xf32>
    %35 = tpu.matmul %33, %34, %cst_28 {dimension_numbers = #tpu.dot_dimension_numbers<[1], [1], [0], [0], [0, 0, 1, 0], [], []>} : vector<16x32xbf16>, vector<32x32xbf16>, vector<16x32xf32> -> vector<16x32xf32>
    %c0_29 = arith.constant 0 : index
    %c0_30 = arith.constant 0 : index
    %36 = vector.load %arg11[%c0_29, %c0_30] : memref<1x32xf32, #tpu.memory_space<vmem>>, vector<1x32xf32>
    %37 = vector.broadcast %36 : vector<1x32xf32> to vector<16x32xf32>
    %38 = arith.addf %35, %37 : vector<16x32xf32>
    %39 = arith.truncf %38 : vector<16x32xf32> to vector<16x32xbf16>
    %cst_31 = arith.constant dense<0.000000e+00> : vector<16x32xf32>
    %40 = tpu.matmul %13, %39, %cst_31 {dimension_numbers = #tpu.dot_dimension_numbers<[1], [0], [0], [1], [0, 0, 1, 1], [], []>} : vector<16x16xbf16>, vector<16x32xbf16>, vector<16x32xf32> -> vector<16x32xf32>
    %cst_32 = arith.constant 0.000000e+00 : f32
    %41 = vector.broadcast %cst_32 : f32 to vector<16x32xf32>
    %42 = arith.maximumf %40, %41 : vector<16x32xf32>
    %43 = arith.truncf %42 : vector<16x32xf32> to vector<16x32xbf16>
    %c0_33 = arith.constant 0 : index
    %c0_34 = arith.constant 0 : index
    %44 = vector.load %arg12[%c0_33, %c0_34] : memref<32x32xbf16, #tpu.memory_space<vmem>>, vector<32x32xbf16>
    %cst_35 = arith.constant dense<0.000000e+00> : vector<16x32xf32>
    %45 = tpu.matmul %43, %44, %cst_35 {dimension_numbers = #tpu.dot_dimension_numbers<[1], [1], [0], [0], [0, 0, 1, 0], [], []>} : vector<16x32xbf16>, vector<32x32xbf16>, vector<16x32xf32> -> vector<16x32xf32>
    %c0_36 = arith.constant 0 : index
    %c0_37 = arith.constant 0 : index
    %46 = vector.load %arg13[%c0_36, %c0_37] : memref<1x32xf32, #tpu.memory_space<vmem>>, vector<1x32xf32>
    %47 = vector.broadcast %46 : vector<1x32xf32> to vector<16x32xf32>
    %48 = arith.addf %45, %47 : vector<16x32xf32>
    %c0_38 = arith.constant 0 : index
    %c0_39 = arith.constant 0 : index
    %c0_40 = arith.constant 0 : index
    %49 = vector.load %arg14[%c0_38, %c0_39, %c0_40] : memref<1x16x32xf32, #tpu.memory_space<vmem>>, vector<1x16x32xf32>
    %50 = vector.shape_cast %49 : vector<1x16x32xf32> to vector<16x32xf32>
    %51 = vector.shape_cast %48 : vector<16x32xf32> to vector<1x16x32xf32>
    tpu.vector_store %arg14[%c0_38, %c0_39, %c0_40], %51 {strides = array<i32>} : memref<1x16x32xf32, #tpu.memory_space<vmem>>, vector<1x16x32xf32>,
    return
  }
  func.func @transform_0(%arg0: i32) -> (i32, i32, i32) {
    %c0_i32 = arith.constant 0 : i32
    %c0_i32_0 = arith.constant 0 : i32
    %c0_i32_1 = arith.constant 0 : i32
    return %arg0, %c0_i32, %c0_i32_0 : i32, i32, i32
  }
  func.func @transform_1(%arg0: i32) -> (i32, i32, i32) {
    %c0_i32 = arith.constant 0 : i32
    %c0_i32_0 = arith.constant 0 : i32
    %c0_i32_1 = arith.constant 0 : i32
    return %arg0, %c0_i32, %c0_i32_0 : i32, i32, i32
  }
  func.func @transform_2(%arg0: i32) -> (i32, i32) {
    %c0_i32 = arith.constant 0 : i32
    %c0_i32_0 = arith.constant 0 : i32
    %c0_i32_1 = arith.constant 0 : i32
    return %c0_i32, %c0_i32_0 : i32, i32
  }
  func.func @transform_3(%arg0: i32) -> (i32, i32) {
    %c0_i32 = arith.constant 0 : i32
    %c0_i32_0 = arith.constant 0 : i32
    %c0_i32_1 = arith.constant 0 : i32
    return %c0_i32, %c0_i32_0 : i32, i32
  }
  func.func @transform_4(%arg0: i32) -> (i32, i32) {
    %c0_i32 = arith.constant 0 : i32
    %c0_i32_0 = arith.constant 0 : i32
    %c0_i32_1 = arith.constant 0 : i32
    return %c0_i32, %c0_i32_0 : i32, i32
  }
  func.func @transform_5(%arg0: i32) -> (i32, i32) {
    %c0_i32 = arith.constant 0 : i32
    %c0_i32_0 = arith.constant 0 : i32
    %c0_i32_1 = arith.constant 0 : i32
    return %c0_i32, %c0_i32_0 : i32, i32
  }
  func.func @transform_6(%arg0: i32) -> (i32, i32) {
    %c0_i32 = arith.constant 0 : i32
    %c0_i32_0 = arith.constant 0 : i32
    %c0_i32_1 = arith.constant 0 : i32
    return %c0_i32, %c0_i32_0 : i32, i32
  }
  func.func @transform_7(%arg0: i32) -> (i32, i32) {
    %c0_i32 = arith.constant 0 : i32
    %c0_i32_0 = arith.constant 0 : i32
    %c0_i32_1 = arith.constant 0 : i32
    return %c0_i32, %c0_i32_0 : i32, i32
  }
  func.func @transform_8(%arg0: i32) -> (i32, i32) {
    %c0_i32 = arith.constant 0 : i32
    %c0_i32_0 = arith.constant 0 : i32
    %c0_i32_1 = arith.constant 0 : i32
    return %c0_i32, %c0_i32_0 : i32, i32
  }
  func.func @transform_9(%arg0: i32) -> (i32, i32) {
    %c0_i32 = arith.constant 0 : i32
    %c0_i32_0 = arith.constant 0 : i32
    %c0_i32_1 = arith.constant 0 : i32
    return %c0_i32, %c0_i32_0 : i32, i32
  }
  func.func @transform_10(%arg0: i32) -> (i32, i32) {
    %c0_i32 = arith.constant 0 : i32
    %c0_i32_0 = arith.constant 0 : i32
    %c0_i32_1 = arith.constant 0 : i32
    return %c0_i32, %c0_i32_0 : i32, i32
  }
  func.func @transform_11(%arg0: i32) -> (i32, i32) {
    %c0_i32 = arith.constant 0 : i32
    %c0_i32_0 = arith.constant 0 : i32
    %c0_i32_1 = arith.constant 0 : i32
    return %c0_i32, %c0_i32_0 : i32, i32
  }
  func.func @transform_12(%arg0: i32) -> (i32, i32) {
    %c0_i32 = arith.constant 0 : i32
    %c0_i32_0 = arith.constant 0 : i32
    %c0_i32_1 = arith.constant 0 : i32
    return %c0_i32, %c0_i32_0 : i32, i32
  }
  func.func @transform_13(%arg0: i32) -> (i32, i32, i32) {
    %c0_i32 = arith.constant 0 : i32
    %c0_i32_0 = arith.constant 0 : i32
    %c0_i32_1 = arith.constant 0 : i32
    return %arg0, %c0_i32, %c0_i32_0 : i32, i32, i32
  }
}

</mosaic_0001>

<llo_original>
// kernel: tpu_custom_call.1
$region0: #{tpu_custom_call.1}
  #allocation0 [shape = 'u32[]', space=smem, size = 0x4, offset = 0x4, fixed_abs, tag = 'smem constant byte address 0x4 - core index']
  #allocation1 [shape = 'u32[144,128]{1,0:T(1,128)}', space=vmem, size = 0x12000, scoped, tag = 'internal scratch']
  %s0 = inlined_call_operand.hbm [shape: bf16[1,16,43], index: 0, kind: input, shape index: {}]
  %s1 = inlined_call_operand.vmem [shape: bf16[1,16,8], index: 1, kind: input, shape index: {}]
  %s2 = inlined_call_operand.hbm [shape: bf16[8,16], index: 2, kind: input, shape index: {}]
  %s3 = inlined_call_operand.vmem [shape: s32[16,1], index: 3, kind: input, shape index: {}]
  %s4 = inlined_call_operand.vmem [shape: s32[1,16], index: 4, kind: input, shape index: {}]
  %s5 = inlined_call_operand.vmem [shape: bf16[32,43], index: 5, kind: input, shape index: {}]
  %s6 = inlined_call_operand.hbm [shape: f32[1,32], index: 6, kind: input, shape index: {}]
  %s7 = inlined_call_operand.vmem [shape: bf16[32,32], index: 7, kind: input, shape index: {}]
  %s8 = inlined_call_operand.hbm [shape: f32[1,32], index: 8, kind: input, shape index: {}]
  %s9 = inlined_call_operand.hbm [shape: bf16[32,32], index: 9, kind: input, shape index: {}]
  %s10 = inlined_call_operand.hbm [shape: f32[1,32], index: 10, kind: input, shape index: {}]
  %s11 = inlined_call_operand.vmem [shape: bf16[32,32], index: 11, kind: input, shape index: {}]
  %s12 = inlined_call_operand.vmem [shape: f32[1,32], index: 12, kind: input, shape index: {}]
  %s13 = inlined_call_operand.hbm [shape: f32[1,16,32], index: 13, kind: output, shape index: {}]
  %s14 = sld [smem:[#allocation0]]
  $region86: #{tpu_custom_call.1} parent=0
    _
  %s16 = ssub.s32 1, %s14
  %s17 = scalar_select 0, %s16, %s14
  $region1: #{tpu_custom_call.1} parent=0
    #allocation2 [shape = 'u8[4096]{0}', space=vmem, size = 0x1000, scoped, tag = 'input window, operand 0, single buffered']
    #allocation3 [shape = 's32[1]{0}', space=sflag, size = 0x4, scoped, tag = 'scoped memory for tpu_custom_call.1']
    #allocation4 [shape = 's32[1]{0}', space=sflag, size = 0x4, scoped, tag = 'scoped memory for tpu_custom_call.1']
    #allocation5 [shape = 'u8[2048]{0}', space=vmem, size = 0x800, scoped, tag = 'input window, operand 2, single buffered']
    #allocation6 [shape = 's32[1]{0}', space=sflag, size = 0x4, scoped, tag = 'scoped memory for tpu_custom_call.1']
    #allocation7 [shape = 'u8[512]{0}', space=vmem, size = 0x400, scoped, tag = 'input window, operand 6, single buffered']
    #allocation8 [shape = 'u8[512]{0}', space=vmem, size = 0x400, scoped, tag = 'input window, operand 8, single buffered']
    #allocation9 [shape = 's32[1]{0}', space=sflag, size = 0x4, scoped, tag = 'scoped memory for tpu_custom_call.1']
    #allocation10 [shape = 'u8[8192]{0}', space=vmem, size = 0x2000, scoped, tag = 'input window, operand 9, single buffered']
    #allocation11 [shape = 'u8[512]{0}', space=vmem, size = 0x400, scoped, tag = 'input window, operand 10, single buffered']
    #allocation12 [shape = 's32[1]{0}', space=sflag, size = 0x4, scoped, tag = 'scoped memory for tpu_custom_call.1']
    #allocation13 [shape = 'u8[8192]{0}', space=vmem, size = 0x2000, scoped, tag = 'output window, operand 0, single buffered']
    %18 = vsyncpa [#allocation3], 0
    %19 = vsyncpa [#allocation6], 0
    %20 = vsyncpa [#allocation9], 0
    %21 = vsyncpa [#allocation12], 0
    %22 = vsyncpa [#allocation4], 0
    // Predicated region
    $region2: #{tpu_custom_call.1} parent=1 // pred_check
      _
    $region3: #{tpu_custom_call.1} parent=1 // pred_check_branch
      %24 = sbr.rel (0) target = $region5
    $region4: #{tpu_custom_call.1} parent=1 // pred_region
      %s26 = ssub.s32 128, 128
      %27 = vsyncadd [#allocation3], %s26
      %s28 = sshll.u32 [#allocation2], 4
      %s29 = int_to_ptr.vmem [resolvable:$true] %s28
      %34 = dma.hbm_to_vmem [thread:$0]  %s0, 128, %s29, [#allocation3], 64, 64, 4
    $region5: #{tpu_custom_call.1} parent=1 // pred_fallthru
      _
    // Predicated region
    $region6: #{tpu_custom_call.1} parent=1 // pred_check
      _
    $region7: #{tpu_custom_call.1} parent=1 // pred_check_branch
      %36 = sbr.rel (0) target = $region9
    $region8: #{tpu_custom_call.1} parent=1 // pred_region
      _
    $region9: #{tpu_custom_call.1} parent=1 // pred_fallthru
      _
    // Predicated region
    $region10: #{tpu_custom_call.1} parent=1 // pred_check
      _
    $region11: #{tpu_custom_call.1} parent=1 // pred_check_branch
      %38 = sbr.rel (0) target = $region13
    $region12: #{tpu_custom_call.1} parent=1 // pred_region
      %s40 = ssub.s32 64, 64
      %41 = vsyncadd [#allocation6], %s40
      %s43 = sshll.u32 [#allocation5], 4
      %s44 = int_to_ptr.vmem [resolvable:$true] %s43
      %46 = dma.hbm_to_vmem [thread:$0]  %s2, 64, %s44, [#allocation6]
    $region13: #{tpu_custom_call.1} parent=1 // pred_fallthru
      _
    // Predicated region
    $region14: #{tpu_custom_call.1} parent=1 // pred_check
      _
    $region15: #{tpu_custom_call.1} parent=1 // pred_check_branch
      %48 = sbr.rel (0) target = $region17
    $region16: #{tpu_custom_call.1} parent=1 // pred_region
      _
    $region17: #{tpu_custom_call.1} parent=1 // pred_fallthru
      _
    // Predicated region
    $region18: #{tpu_custom_call.1} parent=1 // pred_check
      _
    $region19: #{tpu_custom_call.1} parent=1 // pred_check_branch
      %50 = sbr.rel (0) target = $region21
    $region20: #{tpu_custom_call.1} parent=1 // pred_region
      _
    $region21: #{tpu_custom_call.1} parent=1 // pred_fallthru
      _
    // Predicated region
    $region22: #{tpu_custom_call.1} parent=1 // pred_check
      _
    $region23: #{tpu_custom_call.1} parent=1 // pred_check_branch
      %52 = sbr.rel (0) target = $region25
    $region24: #{tpu_custom_call.1} parent=1 // pred_region
      _
    $region25: #{tpu_custom_call.1} parent=1 // pred_fallthru
      _
    // Predicated region
    $region26: #{tpu_custom_call.1} parent=1 // pred_check
      _
    $region27: #{tpu_custom_call.1} parent=1 // pred_check_branch
      %54 = sbr.rel (0) target = $region29
    $region28: #{tpu_custom_call.1} parent=1 // pred_region
      %s56 = ssub.s32 16, 16
      %57 = vsyncadd [#allocation6], %s56
      %s59 = sshll.u32 [#allocation7], 4
      %s60 = int_to_ptr.vmem [resolvable:$true] %s59
      %62 = dma.hbm_to_vmem [thread:$0]  %s6, 16, %s60, [#allocation6]
    $region29: #{tpu_custom_call.1} parent=1 // pred_fallthru
      _
    // Predicated region
    $region30: #{tpu_custom_call.1} parent=1 // pred_check
      _
    $region31: #{tpu_custom_call.1} parent=1 // pred_check_branch
      %64 = sbr.rel (0) target = $region33
    $region32: #{tpu_custom_call.1} parent=1 // pred_region
      _
    $region33: #{tpu_custom_call.1} parent=1 // pred_fallthru
      _
    // Predicated region
    $region34: #{tpu_custom_call.1} parent=1 // pred_check
      _
    $region35: #{tpu_custom_call.1} parent=1 // pred_check_branch
      %66 = sbr.rel (0) target = $region37
    $region36: #{tpu_custom_call.1} parent=1 // pred_region
      %s68 = ssub.s32 16, 16
      %69 = vsyncadd [#allocation9], %s68
      %s71 = sshll.u32 [#allocation8], 4
      %s72 = int_to_ptr.vmem [resolvable:$true] %s71
      %74 = dma.hbm_to_vmem [thread:$0]  %s8, 16, %s72, [#allocation9]
    $region37: #{tpu_custom_call.1} parent=1 // pred_fallthru
      _
    // Predicated region
    $region38: #{tpu_custom_call.1} parent=1 // pred_check
      _
    $region39: #{tpu_custom_call.1} parent=1 // pred_check_branch
      %76 = sbr.rel (0) target = $region41
    $region40: #{tpu_custom_call.1} parent=1 // pred_region
      %s78 = ssub.s32 256, 256
      %79 = vsyncadd [#allocation9], %s78
      %s80 = sshll.u32 [#allocation10], 4
      %s81 = int_to_ptr.vmem [resolvable:$true] %s80
      %86 = dma.hbm_to_vmem [thread:$0]  %s9, 256, %s81, [#allocation9], 64, 64, 4
    $region41: #{tpu_custom_call.1} parent=1 // pred_fallthru
      _
    // Predicated region
    $region42: #{tpu_custom_call.1} parent=1 // pred_check
      _
    $region43: #{tpu_custom_call.1} parent=1 // pred_check_branch
      %88 = sbr.rel (0) target = $region45
    $region44: #{tpu_custom_call.1} parent=1 // pred_region
      %s90 = ssub.s32 16, 16
      %91 = vsyncadd [#allocation12], %s90
      %s93 = sshll.u32 [#allocation11], 4
      %s94 = int_to_ptr.vmem [resolvable:$true] %s93
      %96 = dma.hbm_to_vmem [thread:$0]  %s10, 16, %s94, [#allocation12]
    $region45: #{tpu_custom_call.1} parent=1 // pred_fallthru
      _
    // Predicated region
    $region46: #{tpu_custom_call.1} parent=1 // pred_check
      _
    $region47: #{tpu_custom_call.1} parent=1 // pred_check_branch
      %98 = sbr.rel (0) target = $region49
    $region48: #{tpu_custom_call.1} parent=1 // pred_region
      _
    $region49: #{tpu_custom_call.1} parent=1 // pred_fallthru
      _
    // Predicated region
    $region50: #{tpu_custom_call.1} parent=1 // pred_check
      _
    $region51: #{tpu_custom_call.1} parent=1 // pred_check_branch
      %100 = sbr.rel (0) target = $region53
    $region52: #{tpu_custom_call.1} parent=1 // pred_region
      _
    $region53: #{tpu_custom_call.1} parent=1 // pred_fallthru
      _
    // Predicated region
    $region54: #{tpu_custom_call.1} parent=1 // pred_check
      _
    $region55: #{tpu_custom_call.1} parent=1 // pred_check_branch
      %102 = sbr.rel (0) target = $region57
    $region56: #{tpu_custom_call.1} parent=1 // pred_region
      %103 = dma.done [#allocation3], 128
    $region57: #{tpu_custom_call.1} parent=1 // pred_fallthru
      _
    // Predicated region
    $region58: #{tpu_custom_call.1} parent=1 // pred_check
      _
    $region59: #{tpu_custom_call.1} parent=1 // pred_check_branch
      %105 = sbr.rel (0) target = $region61
    $region60: #{tpu_custom_call.1} parent=1 // pred_region
      %106 = dma.done [#allocation6], 64
    $region61: #{tpu_custom_call.1} parent=1 // pred_fallthru
      _
    // Predicated region
    $region62: #{tpu_custom_call.1} parent=1 // pred_check
      _
    $region63: #{tpu_custom_call.1} parent=1 // pred_check_branch
      %108 = sbr.rel (0) target = $region65
    $region64: #{tpu_custom_call.1} parent=1 // pred_region
      %109 = dma.done [#allocation6], 16
    $region65: #{tpu_custom_call.1} parent=1 // pred_fallthru
      _
    // Predicated region
    $region66: #{tpu_custom_call.1} parent=1 // pred_check
      _
    $region67: #{tpu_custom_call.1} parent=1 // pred_check_branch
      %111 = sbr.rel (0) target = $region69
    $region68: #{tpu_custom_call.1} parent=1 // pred_region
      %112 = dma.done [#allocation9], 16
    $region69: #{tpu_custom_call.1} parent=1 // pred_fallthru
      _
    // Predicated region
    $region70: #{tpu_custom_call.1} parent=1 // pred_check
      _
    $region71: #{tpu_custom_call.1} parent=1 // pred_check_branch
      %114 = sbr.rel (0) target = $region73
    $region72: #{tpu_custom_call.1} parent=1 // pred_region
      %115 = dma.done [#allocation9], 256
    $region73: #{tpu_custom_call.1} parent=1 // pred_fallthru
      _
    // Predicated region
    $region74: #{tpu_custom_call.1} parent=1 // pred_check
      _
    $region75: #{tpu_custom_call.1} parent=1 // pred_check_branch
      %117 = sbr.rel (0) target = $region77
    $region76: #{tpu_custom_call.1} parent=1 // pred_region
      %118 = dma.done [#allocation12], 16
    $region77: #{tpu_custom_call.1} parent=1 // pred_fallthru
      _
    %v120 = vld [vmem:[#allocation2] sm:$0xf]
    %v121 = vld [vmem:[#allocation2 + $0x4] sm:$0xf]
    %v122 = vld [vmem:[%s1] sm:$0xf]
    %v123 = vld [vmem:[%s1 + $0x4] sm:$0xf]
    %v124 = vld [vmem:[#allocation5] sm:$0xf]
    %v127 = vunpack.c.l.b16 %v122
    %v128 = vunpack.c.l.b16 %v123
    %v129 = vpack.c.b16 %v128, %v127
    %vm130 = vcmask 64512
    %v132 = vsel %vm130, %v129, 0
    %vm134 = vcmask 1043456
    %v136 = vsel %vm134, %v124, 0
    %138 = vmatprep.subr.bf16.mxu0 0
    %139 = vmatpush1.bf16.msra.mxu0 0
    %140 = vmatprep.subr.bf16.mxu0 0
    %141 = vmatpush1.bf16.msra.mxu0 0
    %142 = vmatprep.subr.bf16.mxu0 0
    %143 = vmatpush1.bf16.msra.mxu0 0
    %144 = vmatprep.subr.bf16.mxu0 0
    %145 = vmatpush1.bf16.msra.mxu0 0
    %146 = vmatprep.subr.bf16.mxu0 0
    %147 = vmatpush1.bf16.msra.mxu0 0
    %148 = vmatprep.subr.bf16.mxu0 0
    %149 = vmatpush1.bf16.msra.mxu0 0
    %150 = vmatprep.subr.bf16.mxu0 0
    %151 = vmatpush1.bf16.msra.mxu0 0
    %152 = vmatprep.subr.bf16.mxu0 0
    %153 = vmatpush1.bf16.msra.mxu0 %v136
    %154 = vmatprep.subr.bf16.mxu0 0
    %155 = vmatpush2.bf16.msra.mxu0 0
    %156 = vmatprep.subr.bf16.mxu0 0
    %157 = vmatpush2.bf16.msra.mxu0 0
    %158 = vmatprep.subr.bf16.mxu0 0
    %159 = vmatpush2.bf16.msra.mxu0 0
    %160 = vmatprep.subr.bf16.mxu0 0
    %161 = vmatpush2.bf16.msra.mxu0 0
    %162 = vmatprep.subr.bf16.mxu0 0
    %163 = vmatpush2.bf16.msra.mxu0 0
    %164 = vmatprep.subr.bf16.mxu0 0
    %165 = vmatpush2.bf16.msra.mxu0 0
    %166 = vmatprep.subr.bf16.mxu0 0
    %167 = vmatpush2.bf16.msra.mxu0 0
    %168 = vmatprep.subr.bf16.mxu0 0
    %169 = vmatpush2.bf16.msra.mxu0 0
    %170 = vmatprep.mubr.bf16.mxu0 0
    %171 = vmatmul.mubr.bf16.gmra.mxu0 %v132
    %v172 = vpop.f32.mrf.mxu0
    %v173 = vadd.f32 0.0, %v172
    %v174 = vpop.f32.mrf.mxu0
    %v175 = vpop.f32.mrf.mxu0
    %v176 = vadd.f32 0.0, %v175
    %v177 = vpop.f32.mrf.mxu0
    %178 = vdwg.mxu0
    %v179 = vld [vmem:[%s3] sm:$0xff]
    %v180 = vld [vmem:[%s3 + $0x8] sm:$0xff]
    %v181 = vld [vmem:[%s4] sm:$0x1]
    %182 = vset.pattern.permute.xlu0 0
    %183 = vperm.xlu0 %182, %v179
    %v184 = vpop.permute.xlu0 %183
    %185 = vset.pattern.permute.xlu0 0
    %186 = vperm.xlu0 %185, %v180
    %v187 = vpop.permute.xlu0 %186
    %v188 = vlaneseq
    %v189 = vshrl.u32 %v188, 7
    %v190 = vsub.s32 0, %v189
    %v191 = vrot.slane %v181, %v190
    %vm192 = vcmp.eq.s32.totalorder %v184, %v191
    %vm193 = vcmp.eq.s32.totalorder %v187, %v191
    %v194 = vsel %vm192, %v173, 0.0
    %v195 = vsel %vm193, %v176, 0.0
    %v196 = vpack.c.bf16 %v195, %v194
    %v197 = vld [vmem:[%s5] sm:$0xf]
    %v198 = vld [vmem:[%s5 + $0x4] sm:$0xf]
    %v199 = vld [vmem:[%s5 + $0x8] sm:$0xf]
    %v200 = vld [vmem:[%s5 + $0xc] sm:$0xf]
    %v201 = vld [vmem:[#allocation7] sm:$0x1]
    %v203 = vlaneseq
    %v204 = vshrl.u32 %v203, 7
    %v205 = vsub.s32 0, %v204
    %v206 = vrot.slane %v201, %v205
    %v210 = vunpack.c.l.b16 %v120
    %v211 = vunpack.c.l.b16 %v121
    %v212 = vpack.c.b16 %v211, %v210
    %v217 = vunpack.c.l.b16 %v197
    %v218 = vunpack.c.l.b16 %v198
    %v219 = vunpack.c.l.b16 %v199
    %v220 = vunpack.c.l.b16 %v200
    %v221 = vpack.c.b16 %v218, %v217
    %v222 = vpack.c.b16 %v220, %v219
    %vm223 = vcmask 351232
    %v225 = vsel %vm223, %v212, 0
    %v228 = vsel %vm223, %v221, 0
    %v231 = vsel %vm223, %v222, 0
    %233 = vmatprep.subr.bf16.mxu0 0
    %234 = vmatpush1.bf16.xpose.msra.mxu0 0
    %235 = vmatprep.subr.bf16.mxu0 0
    %236 = vmatpush1.bf16.xpose.msra.mxu0 0
    %237 = vmatprep.subr.bf16.mxu0 0
    %238 = vmatpush1.bf16.xpose.msra.mxu0 0
    %239 = vmatprep.subr.bf16.mxu0 0
    %240 = vmatpush1.bf16.xpose.msra.mxu0 0
    %241 = vmatprep.subr.bf16.mxu0 0
    %242 = vmatpush1.bf16.xpose.msra.mxu0 0
    %243 = vmatprep.subr.bf16.mxu0 0
    %244 = vmatpush1.bf16.xpose.msra.mxu0 0
    %245 = vmatprep.subr.bf16.mxu0 0
    %246 = vmatpush1.bf16.xpose.msra.mxu0 %v231
    %247 = vmatprep.subr.bf16.mxu0 0
    %248 = vmatpush1.bf16.xpose.msra.mxu0 %v228
    %249 = vmatprep.subr.bf16.mxu0 0
    %250 = vmatpush2.bf16.xpose.msra.mxu0 0
    %251 = vmatprep.subr.bf16.mxu0 0
    %252 = vmatpush2.bf16.xpose.msra.mxu0 0
    %253 = vmatprep.subr.bf16.mxu0 0
    %254 = vmatpush2.bf16.xpose.msra.mxu0 0
    %255 = vmatprep.subr.bf16.mxu0 0
    %256 = vmatpush2.bf16.xpose.msra.mxu0 0
    %257 = vmatprep.subr.bf16.mxu0 0
    %258 = vmatpush2.bf16.xpose.msra.mxu0 0
    %259 = vmatprep.subr.bf16.mxu0 0
    %260 = vmatpush2.bf16.xpose.msra.mxu0 0
    %261 = vmatprep.subr.bf16.mxu0 0
    %262 = vmatpush2.bf16.xpose.msra.mxu0 0
    %263 = vmatprep.subr.bf16.mxu0 0
    %264 = vmatpush2.bf16.xpose.msra.mxu0 0
    %265 = vmatprep.mubr.bf16.mxu0 0
    %266 = vmatmul.mubr.bf16.gmra.mxu0 %v225
    %v267 = vpop.f32.mrf.mxu0
    %v268 = vadd.f32 %v206, %v267
    %v269 = vpop.f32.mrf.mxu0
    %v270 = vpop.f32.mrf.mxu0
    %v271 = vadd.f32 %v206, %v270
    %v272 = vpop.f32.mrf.mxu0
    %273 = vdwg.mxu0
    %v274 = vpack.c.bf16 %v271, %v268
    %vm275 = vcmask 130048
    %v277 = vsel %vm275, %v196, 0
    %279 = vmatprep.subr.bf16.mxu0 0
    %280 = vmatpush1.bf16.msra.mxu0 0
    %281 = vmatprep.subr.bf16.mxu0 0
    %282 = vmatpush1.bf16.msra.mxu0 0
    %283 = vmatprep.subr.bf16.mxu0 0
    %284 = vmatpush1.bf16.msra.mxu0 0
    %285 = vmatprep.subr.bf16.mxu0 0
    %286 = vmatpush1.bf16.msra.mxu0 0
    %287 = vmatprep.subr.bf16.mxu0 0
    %288 = vmatpush1.bf16.msra.mxu0 0
    %289 = vmatprep.subr.bf16.mxu0 0
    %290 = vmatpush1.bf16.msra.mxu0 0
    %291 = vmatprep.subr.bf16.mxu0 0
    %292 = vmatpush1.bf16.msra.mxu0 0
    %293 = vmatprep.subr.bf16.mxu0 0
    %294 = vmatpush1.bf16.msra.mxu0 %v274
    %295 = vmatprep.subr.bf16.mxu0 0
    %296 = vmatpush2.bf16.msra.mxu0 0
    %297 = vmatprep.subr.bf16.mxu0 0
    %298 = vmatpush2.bf16.msra.mxu0 0
    %299 = vmatprep.subr.bf16.mxu0 0
    %300 = vmatpush2.bf16.msra.mxu0 0
    %301 = vmatprep.subr.bf16.mxu0 0
    %302 = vmatpush2.bf16.msra.mxu0 0
    %303 = vmatprep.subr.bf16.mxu0 0
    %304 = vmatpush2.bf16.msra.mxu0 0
    %305 = vmatprep.subr.bf16.mxu0 0
    %306 = vmatpush2.bf16.msra.mxu0 0
    %307 = vmatprep.subr.bf16.mxu0 0
    %308 = vmatpush2.bf16.msra.mxu0 0
    %309 = vmatprep.subr.bf16.mxu0 0
    %310 = vmatpush2.bf16.msra.mxu0 0
    %311 = vmatprep.mubr.bf16.mxu0 0
    %312 = vmatmul.mubr.bf16.gmra.mxu0 %v277
    %v313 = vpop.f32.mrf.mxu0
    %v314 = vadd.f32 0.0, %v313
    %v315 = vpop.f32.mrf.mxu0
    %v316 = vpop.f32.mrf.mxu0
    %v317 = vadd.f32 0.0, %v316
    %v318 = vpop.f32.mrf.mxu0
    %319 = vdwg.mxu0
    %v320 = vmax.f32 %v314, 0.0
    %v321 = vmax.f32 %v317, 0.0
    %v322 = vpack.c.bf16 %v321, %v320
    %v323 = vld [vmem:[%s7] sm:$0xf]
    %v324 = vld [vmem:[%s7 + $0x4] sm:$0xf]
    %v325 = vld [vmem:[%s7 + $0x8] sm:$0xf]
    %v326 = vld [vmem:[%s7 + $0xc] sm:$0xf]
    %v327 = vld [vmem:[#allocation8] sm:$0x1]
    %v329 = vlaneseq
    %v330 = vshrl.u32 %v329, 7
    %v331 = vsub.s32 0, %v330
    %v332 = vrot.slane %v327, %v331
    %v338 = vunpack.c.l.b16 %v323
    %v339 = vunpack.c.l.b16 %v324
    %v340 = vunpack.c.l.b16 %v325
    %v341 = vunpack.c.l.b16 %v326
    %v342 = vpack.c.b16 %v339, %v338
    %v343 = vpack.c.b16 %v341, %v340
    %vm344 = vcmask 261120
    %v346 = vsel %vm344, %v322, 0
    %v349 = vsel %vm344, %v342, 0
    %v352 = vsel %vm344, %v343, 0
    %354 = vmatprep.subr.bf16.mxu0 0
    %355 = vmatpush1.bf16.xpose.msra.mxu0 0
    %356 = vmatprep.subr.bf16.mxu0 0
    %357 = vmatpush1.bf16.xpose.msra.mxu0 0
    %358 = vmatprep.subr.bf16.mxu0 0
    %359 = vmatpush1.bf16.xpose.msra.mxu0 0
    %360 = vmatprep.subr.bf16.mxu0 0
    %361 = vmatpush1.bf16.xpose.msra.mxu0 0
    %362 = vmatprep.subr.bf16.mxu0 0
    %363 = vmatpush1.bf16.xpose.msra.mxu0 0
    %364 = vmatprep.subr.bf16.mxu0 0
    %365 = vmatpush1.bf16.xpose.msra.mxu0 0
    %366 = vmatprep.subr.bf16.mxu0 0
    %367 = vmatpush1.bf16.xpose.msra.mxu0 %v352
    %368 = vmatprep.subr.bf16.mxu0 0
    %369 = vmatpush1.bf16.xpose.msra.mxu0 %v349
    %370 = vmatprep.subr.bf16.mxu0 0
    %371 = vmatpush2.bf16.xpose.msra.mxu0 0
    %372 = vmatprep.subr.bf16.mxu0 0
    %373 = vmatpush2.bf16.xpose.msra.mxu0 0
    %374 = vmatprep.subr.bf16.mxu0 0
    %375 = vmatpush2.bf16.xpose.msra.mxu0 0
    %376 = vmatprep.subr.bf16.mxu0 0
    %377 = vmatpush2.bf16.xpose.msra.mxu0 0
    %378 = vmatprep.subr.bf16.mxu0 0
    %379 = vmatpush2.bf16.xpose.msra.mxu0 0
    %380 = vmatprep.subr.bf16.mxu0 0
    %381 = vmatpush2.bf16.xpose.msra.mxu0 0
    %382 = vmatprep.subr.bf16.mxu0 0
    %383 = vmatpush2.bf16.xpose.msra.mxu0 0
    %384 = vmatprep.subr.bf16.mxu0 0
    %385 = vmatpush2.bf16.xpose.msra.mxu0 0
    %386 = vmatprep.mubr.bf16.mxu0 0
    %387 = vmatmul.mubr.bf16.gmra.mxu0 %v346
    %v388 = vpop.f32.mrf.mxu0
    %v389 = vadd.f32 %v332, %v388
    %v390 = vpop.f32.mrf.mxu0
    %v391 = vpop.f32.mrf.mxu0
    %v392 = vadd.f32 %v332, %v391
    %v393 = vpop.f32.mrf.mxu0
    %394 = vdwg.mxu0
    %v395 = vpack.c.bf16 %v392, %v389
    %396 = vmatprep.subr.bf16.mxu0 0
    %397 = vmatpush1.bf16.msra.mxu0 0
    %398 = vmatprep.subr.bf16.mxu0 0
    %399 = vmatpush1.bf16.msra.mxu0 0
    %400 = vmatprep.subr.bf16.mxu0 0
    %401 = vmatpush1.bf16.msra.mxu0 0
    %402 = vmatprep.subr.bf16.mxu0 0
    %403 = vmatpush1.bf16.msra.mxu0 0
    %404 = vmatprep.subr.bf16.mxu0 0
    %405 = vmatpush1.bf16.msra.mxu0 0
    %406 = vmatprep.subr.bf16.mxu0 0
    %407 = vmatpush1.bf16.msra.mxu0 0
    %408 = vmatprep.subr.bf16.mxu0 0
    %409 = vmatpush1.bf16.msra.mxu0 0
    %410 = vmatprep.subr.bf16.mxu0 0
    %411 = vmatpush1.bf16.msra.mxu0 %v395
    %412 = vmatprep.subr.bf16.mxu0 0
    %413 = vmatpush2.bf16.msra.mxu0 0
    %414 = vmatprep.subr.bf16.mxu0 0
    %415 = vmatpush2.bf16.msra.mxu0 0
    %416 = vmatprep.subr.bf16.mxu0 0
    %417 = vmatpush2.bf16.msra.mxu0 0
    %418 = vmatprep.subr.bf16.mxu0 0
    %419 = vmatpush2.bf16.msra.mxu0 0
    %420 = vmatprep.subr.bf16.mxu0 0
    %421 = vmatpush2.bf16.msra.mxu0 0
    %422 = vmatprep.subr.bf16.mxu0 0
    %423 = vmatpush2.bf16.msra.mxu0 0
    %424 = vmatprep.subr.bf16.mxu0 0
    %425 = vmatpush2.bf16.msra.mxu0 0
    %426 = vmatprep.subr.bf16.mxu0 0
    %427 = vmatpush2.bf16.msra.mxu0 0
    %428 = vmatprep.mubr.bf16.mxu0 0
    %429 = vmatmul.mubr.bf16.gmra.mxu0 %v277
    %v430 = vpop.f32.mrf.mxu0
    %v431 = vadd.f32 0.0, %v430
    %v432 = vpop.f32.mrf.mxu0
    %v433 = vpop.f32.mrf.mxu0
    %v434 = vadd.f32 0.0, %v433
    %v435 = vpop.f32.mrf.mxu0
    %436 = vdwg.mxu0
    %v437 = vmax.f32 %v431, 0.0
    %v438 = vmax.f32 %v434, 0.0
    %v439 = vpack.c.bf16 %v438, %v437
    %v440 = vld [vmem:[#allocation10] sm:$0xf]
    %v441 = vld [vmem:[#allocation10 + $0x4] sm:$0xf]
    %v442 = vld [vmem:[#allocation10 + $0x8] sm:$0xf]
    %v443 = vld [vmem:[#allocation10 + $0xc] sm:$0xf]
    %v444 = vld [vmem:[#allocation11] sm:$0x1]
    %v446 = vlaneseq
    %v447 = vshrl.u32 %v446, 7
    %v448 = vsub.s32 0, %v447
    %v449 = vrot.slane %v444, %v448
    %v455 = vunpack.c.l.b16 %v440
    %v456 = vunpack.c.l.b16 %v441
    %v457 = vunpack.c.l.b16 %v442
    %v458 = vunpack.c.l.b16 %v443
    %v459 = vpack.c.b16 %v456, %v455
    %v460 = vpack.c.b16 %v458, %v457
    %v462 = vsel %vm344, %v439, 0
    %v465 = vsel %vm344, %v459, 0
    %v468 = vsel %vm344, %v460, 0
    %470 = vmatprep.subr.bf16.mxu0 0
    %471 = vmatpush1.bf16.xpose.msra.mxu0 0
    %472 = vmatprep.subr.bf16.mxu0 0
    %473 = vmatpush1.bf16.xpose.msra.mxu0 0
    %474 = vmatprep.subr.bf16.mxu0 0
    %475 = vmatpush1.bf16.xpose.msra.mxu0 0
    %476 = vmatprep.subr.bf16.mxu0 0
    %477 = vmatpush1.bf16.xpose.msra.mxu0 0
    %478 = vmatprep.subr.bf16.mxu0 0
    %479 = vmatpush1.bf16.xpose.msra.mxu0 0
    %480 = vmatprep.subr.bf16.mxu0 0
    %481 = vmatpush1.bf16.xpose.msra.mxu0 0
    %482 = vmatprep.subr.bf16.mxu0 0
    %483 = vmatpush1.bf16.xpose.msra.mxu0 %v468
    %484 = vmatprep.subr.bf16.mxu0 0
    %485 = vmatpush1.bf16.xpose.msra.mxu0 %v465
    %486 = vmatprep.subr.bf16.mxu0 0
    %487 = vmatpush2.bf16.xpose.msra.mxu0 0
    %488 = vmatprep.subr.bf16.mxu0 0
    %489 = vmatpush2.bf16.xpose.msra.mxu0 0
    %490 = vmatprep.subr.bf16.mxu0 0
    %491 = vmatpush2.bf16.xpose.msra.mxu0 0
    %492 = vmatprep.subr.bf16.mxu0 0
    %493 = vmatpush2.bf16.xpose.msra.mxu0 0
    %494 = vmatprep.subr.bf16.mxu0 0
    %495 = vmatpush2.bf16.xpose.msra.mxu0 0
    %496 = vmatprep.subr.bf16.mxu0 0
    %497 = vmatpush2.bf16.xpose.msra.mxu0 0
    %498 = vmatprep.subr.bf16.mxu0 0
    %499 = vmatpush2.bf16.xpose.msra.mxu0 0
    %500 = vmatprep.subr.bf16.mxu0 0
    %501 = vmatpush2.bf16.xpose.msra.mxu0 0
    %502 = vmatprep.mubr.bf16.mxu0 0
    %503 = vmatmul.mubr.bf16.gmra.mxu0 %v462
    %v504 = vpop.f32.mrf.mxu0
    %v505 = vadd.f32 %v449, %v504
    %v506 = vpop.f32.mrf.mxu0
    %v507 = vpop.f32.mrf.mxu0
    %v508 = vadd.f32 %v449, %v507
    %v509 = vpop.f32.mrf.mxu0
    %510 = vdwg.mxu0
    %v511 = vpack.c.bf16 %v508, %v505
    %512 = vmatprep.subr.bf16.mxu0 0
    %513 = vmatpush1.bf16.msra.mxu0 0
    %514 = vmatprep.subr.bf16.mxu0 0
    %515 = vmatpush1.bf16.msra.mxu0 0
    %516 = vmatprep.subr.bf16.mxu0 0
    %517 = vmatpush1.bf16.msra.mxu0 0
    %518 = vmatprep.subr.bf16.mxu0 0
    %519 = vmatpush1.bf16.msra.mxu0 0
    %520 = vmatprep.subr.bf16.mxu0 0
    %521 = vmatpush1.bf16.msra.mxu0 0
    %522 = vmatprep.subr.bf16.mxu0 0
    %523 = vmatpush1.bf16.msra.mxu0 0
    %524 = vmatprep.subr.bf16.mxu0 0
    %525 = vmatpush1.bf16.msra.mxu0 0
    %526 = vmatprep.subr.bf16.mxu0 0
    %527 = vmatpush1.bf16.msra.mxu0 %v511
    %528 = vmatprep.subr.bf16.mxu0 0
    %529 = vmatpush2.bf16.msra.mxu0 0
    %530 = vmatprep.subr.bf16.mxu0 0
    %531 = vmatpush2.bf16.msra.mxu0 0
    %532 = vmatprep.subr.bf16.mxu0 0
    %533 = vmatpush2.bf16.msra.mxu0 0
    %534 = vmatprep.subr.bf16.mxu0 0
    %535 = vmatpush2.bf16.msra.mxu0 0
    %536 = vmatprep.subr.bf16.mxu0 0
    %537 = vmatpush2.bf16.msra.mxu0 0
    %538 = vmatprep.subr.bf16.mxu0 0
    %539 = vmatpush2.bf16.msra.mxu0 0
    %540 = vmatprep.subr.bf16.mxu0 0
    %541 = vmatpush2.bf16.msra.mxu0 0
    %542 = vmatprep.subr.bf16.mxu0 0
    %543 = vmatpush2.bf16.msra.mxu0 0
    %544 = vmatprep.mubr.bf16.mxu0 0
    %545 = vmatmul.mubr.bf16.gmra.mxu0 %v277
    %v546 = vpop.f32.mrf.mxu0
    %v547 = vadd.f32 0.0, %v546
    %v548 = vpop.f32.mrf.mxu0
    %v549 = vpop.f32.mrf.mxu0
    %v550 = vadd.f32 0.0, %v549
    %v551 = vpop.f32.mrf.mxu0
    %552 = vdwg.mxu0
    %v553 = vmax.f32 %v547, 0.0
    %v554 = vmax.f32 %v550, 0.0
    %v555 = vpack.c.bf16 %v554, %v553
    %v556 = vld [vmem:[%s11] sm:$0xf]
    %v557 = vld [vmem:[%s11 + $0x4] sm:$0xf]
    %v558 = vld [vmem:[%s11 + $0x8] sm:$0xf]
    %v559 = vld [vmem:[%s11 + $0xc] sm:$0xf]
    %v560 = vld [vmem:[%s12] sm:$0x1]
    %v562 = vlaneseq
    %v563 = vshrl.u32 %v562, 7
    %v564 = vsub.s32 0, %v563
    %v565 = vrot.slane %v560, %v564
    %v571 = vunpack.c.l.b16 %v556
    %v572 = vunpack.c.l.b16 %v557
    %v573 = vunpack.c.l.b16 %v558
    %v574 = vunpack.c.l.b16 %v559
    %v575 = vpack.c.b16 %v572, %v571
    %v576 = vpack.c.b16 %v574, %v573
    %v578 = vsel %vm344, %v555, 0
    %v581 = vsel %vm344, %v575, 0
    %v584 = vsel %vm344, %v576, 0
    %586 = vmatprep.subr.bf16.mxu0 0
    %587 = vmatpush1.bf16.xpose.msra.mxu0 0
    %588 = vmatprep.subr.bf16.mxu0 0
    %589 = vmatpush1.bf16.xpose.msra.mxu0 0
    %590 = vmatprep.subr.bf16.mxu0 0
    %591 = vmatpush1.bf16.xpose.msra.mxu0 0
    %592 = vmatprep.subr.bf16.mxu0 0
    %593 = vmatpush1.bf16.xpose.msra.mxu0 0
    %594 = vmatprep.subr.bf16.mxu0 0
    %595 = vmatpush1.bf16.xpose.msra.mxu0 0
    %596 = vmatprep.subr.bf16.mxu0 0
    %597 = vmatpush1.bf16.xpose.msra.mxu0 0
    %598 = vmatprep.subr.bf16.mxu0 0
    %599 = vmatpush1.bf16.xpose.msra.mxu0 %v584
    %600 = vmatprep.subr.bf16.mxu0 0
    %601 = vmatpush1.bf16.xpose.msra.mxu0 %v581
    %602 = vmatprep.subr.bf16.mxu0 0
    %603 = vmatpush2.bf16.xpose.msra.mxu0 0
    %604 = vmatprep.subr.bf16.mxu0 0
    %605 = vmatpush2.bf16.xpose.msra.mxu0 0
    %606 = vmatprep.subr.bf16.mxu0 0
    %607 = vmatpush2.bf16.xpose.msra.mxu0 0
    %608 = vmatprep.subr.bf16.mxu0 0
    %609 = vmatpush2.bf16.xpose.msra.mxu0 0
    %610 = vmatprep.subr.bf16.mxu0 0
    %611 = vmatpush2.bf16.xpose.msra.mxu0 0
    %612 = vmatprep.subr.bf16.mxu0 0
    %613 = vmatpush2.bf16.xpose.msra.mxu0 0
    %614 = vmatprep.subr.bf16.mxu0 0
    %615 = vmatpush2.bf16.xpose.msra.mxu0 0
    %616 = vmatprep.subr.bf16.mxu0 0
    %617 = vmatpush2.bf16.xpose.msra.mxu0 0
    %618 = vmatprep.mubr.bf16.mxu0 0
    %619 = vmatmul.mubr.bf16.gmra.mxu0 %v578
    %v620 = vpop.f32.mrf.mxu0
    %v621 = vadd.f32 %v565, %v620
    %v622 = vpop.f32.mrf.mxu0
    %v623 = vpop.f32.mrf.mxu0
    %v624 = vadd.f32 %v565, %v623
    %v625 = vpop.f32.mrf.mxu0
    %626 = vdwg.mxu0
    %627 = vst.msk [vmem:[#allocation13] sm:$0xff] %vm344, %v621
    %628 = vst.msk [vmem:[#allocation13 + $0x8] sm:$0xff] %vm344, %v624
    // Predicated region
    $region78: #{tpu_custom_call.1} parent=1 // pred_check
      _
    $region79: #{tpu_custom_call.1} parent=1 // pred_check_branch
      %630 = sbr.rel (0) target = $region81
    $region80: #{tpu_custom_call.1} parent=1 // pred_region
      %s632 = ssub.s32 256, 256
      %633 = vsyncadd [#allocation4], %s632
      %s634 = sshll.u32 [#allocation13], 4
      %s635 = int_to_ptr.vmem [resolvable:$true] %s634
      %640 = dma.vmem_to_hbm [thread:$0]  %s635, 256, %s13, [#allocation4], 128, 128, 8
    $region81: #{tpu_custom_call.1} parent=1 // pred_fallthru
      _
    // Predicated region
    $region82: #{tpu_custom_call.1} parent=1 // pred_check
      _
    $region83: #{tpu_custom_call.1} parent=1 // pred_check_branch
      %642 = sbr.rel (0) target = $region85
    $region84: #{tpu_custom_call.1} parent=1 // pred_region
      %643 = dma.done [#allocation4], 256
    $region85: #{tpu_custom_call.1} parent=1 // pred_fallthru
      _
    %644 = vsyncpa [#allocation3], 1
    %645 = vsyncpa [#allocation6], 1
    %646 = vsyncpa [#allocation9], 1
    %647 = vsyncpa [#allocation12], 1
    %648 = vsyncpa [#allocation4], 1

</llo_original>
